<compile_context>
chip_gen: v6e
topology: v6e:2x2x1
jax: 0.10.0
libtpu: 0.0.40
codegen_flags: <defaults>
</compile_context>

<pallas_src>
import functools

import jax
import jax.numpy as jnp
from jax.experimental import pallas as pl
from jax.experimental.pallas import tpu as pltpu

IN_FEATURES = 1000


def _round_up(a, b):
    return ((a + b - 1) // b) * b


# --------------------------------------------------------------------------
# One-time weight preparation (the "init" path — NOT per forward call).
# --------------------------------------------------------------------------
def prepare_ftlayer_weight(weight, norm="none", *, dtype=jnp.bfloat16,
                           pre_apply_norm=True):
    """Transpose to (K, C), pad C to a lane-dense multiple, (optionally)
    pre-apply sigmoid in f32, cast to the streaming dtype.

    Returns (wt, apply_sigmoid_in_kernel).
    """
    C, K = weight.shape
    assert K == IN_FEATURES
    wt = weight.T.astype(jnp.float32)  # (K, C), MXU-native RHS layout

    apply_in_kernel = False
    if norm == "sigmoid":
        if pre_apply_norm:
            wt = jax.nn.sigmoid(wt)      # done once, in f32, at init
        else:
            apply_in_kernel = True

    # Pad the class axis: multiple of 128 (lane dense); for big class counts
    # pad to 512 so the padded extent always has a decent tile divisor.
    pad_to = 128 if C <= 1024 else 512
    c_pad = _round_up(C, pad_to)
    if c_pad != C:
        # Zero padding: padded columns contribute 0 when sigmoid is
        # pre-applied; with in-kernel sigmoid they produce 0.5-weighted junk
        # that the final out[:, :C] slice discards (do not remove that slice).
        wt = jnp.pad(wt, ((0, 0), (0, c_pad - C)))

    return wt.astype(dtype), apply_in_kernel


# --------------------------------------------------------------------------
# Kernel
# --------------------------------------------------------------------------
def _ftlayer_kernel(x_ref, wt_ref, o_ref, *, apply_sigmoid):
    # x_ref:  (TB, K)  resident per-B-tile in VMEM (bf16 or f32)
    # wt_ref: (K, TC)  streamed, double-buffered weight tile
    # o_ref:  (TB, TC) f32 output tile
    w = wt_ref[...]
    if apply_sigmoid:
        # sigmoid via tanh identity: 1 EUP op/elem, computed in f32
        # (v5e has no bf16 EUP; keeps EUP off the v7x critical path).
        wf = w.astype(jnp.float32)
        w = (0.5 * (1.0 + jnp.tanh(0.5 * wf))).astype(wt_ref.dtype)
    o_ref[...] = jnp.dot(
        x_ref[...], w, preferred_element_type=jnp.float32
    ).astype(o_ref.dtype)


def _pick_tile_c(c_pad, target_c):
    """Largest multiple-of-128 divisor of c_pad <= target_c, capped so the
    grid has >= 2 C tiles when possible (v7x megacore)."""
    m = c_pad // 128
    tgt_blocks = max(1, min(max(target_c // 128, 1), m // 2 if m >= 2 else m))
    best = 1
    for d in range(1, m + 1):
        if m % d == 0 and d <= tgt_blocks:
            best = d
    return best * 128


# --------------------------------------------------------------------------
# Forward
# --------------------------------------------------------------------------
def ftlayer_forward(x, wt, class_num, *, apply_sigmoid=False,
                    tile_c=4096, tile_b=256):
    """x: (B, 1000); wt: prepared (K, C_pad) weight from prepare_ftlayer_weight."""
    B, K = x.shape
    Kw, c_pad = wt.shape
    assert K == Kw == IN_FEATURES

    # Stream x in the same dtype as the weight (one cheap cast of a small array).
    x = x.astype(wt.dtype)

    # B tiling guard: small B stays fully resident, large B gets tiled.
    if B <= tile_b:
        tb, b_pad = B, B
    else:
        tb = tile_b
        b_pad = _round_up(B, tb)
        if b_pad != B:
            x = jnp.pad(x, ((0, b_pad - B), (0, 0)))

    tc = _pick_tile_c(c_pad, tile_c)
    grid = (b_pad // tb, c_pad // tc)

    x_bytes = jnp.dtype(x.dtype).itemsize
    w_bytes = jnp.dtype(wt.dtype).itemsize
    # Double-buffered per-step VMEM footprint (+25% headroom), within physical
    # limits of every generation at the default tile sizes.
    vmem_needed = 2 * (tb * K * x_bytes + K * tc * w_bytes + tb * tc * 4)
    vmem_limit = min(100 * 1024 * 1024,
                     max(32 * 1024 * 1024, int(vmem_needed * 1.25)))

    kernel = functools.partial(_ftlayer_kernel, apply_sigmoid=apply_sigmoid)
    out = pl.pallas_call(
        kernel,
        out_shape=jax.ShapeDtypeStruct((b_pad, c_pad), jnp.float32),
        grid_spec=pltpu.PrefetchScalarGridSpec(
            num_scalar_prefetch=0,
            grid=grid,
            in_specs=[
                # x: resident per B tile (constant across the C sweep).
                pl.BlockSpec((tb, K), lambda i, j: (i, 0)),
                # weight: streamed (double-buffered) over the class axis.
                pl.BlockSpec((K, tc), lambda i, j: (0, j)),
            ],
            out_specs=pl.BlockSpec((tb, tc), lambda i, j: (i, j)),
        ),
        compiler_params=pltpu.CompilerParams(
            # Both axes independent -> megacore sharding on v7x; ~neutral on
            # single-TC v5e/v6e.
            dimension_semantics=("parallel", "parallel"),
            vmem_limit_bytes=vmem_limit,
        ),
        cost_estimate=pl.CostEstimate(
            flops=2 * b_pad * K * c_pad,
            transcendentals=(K * c_pad if apply_sigmoid else 0),
            bytes_accessed=(b_pad * K * x_bytes
                            + K * c_pad * w_bytes
                            + b_pad * c_pad * 4),
        ),
    )(x, wt)

    # Keep both slices: padded B rows are zeros, padded C columns are junk
    # when the sigmoid runs in-kernel.
    return out[:B, :class_num]


def init_ftlayer_weight(key, class_num):
    # nn.Linear-style init: U(-1/sqrt(fan_in), 1/sqrt(fan_in)); forward never
    # uses the bias, so only the weight is created.
    bound = 1.0 / jnp.sqrt(jnp.float32(IN_FEATURES))
    return jax.random.uniform(
        key, (class_num, IN_FEATURES), dtype=jnp.float32,
        minval=-bound, maxval=bound)


if __name__ == "__main__":
    key = jax.random.PRNGKey(0)
    kx, kw1, kw2 = jax.random.split(key, 3)

    batch = 8
    x = jax.random.normal(kx, (batch, IN_FEATURES), dtype=jnp.float32)
    x_bf = x.astype(jnp.bfloat16).astype(jnp.float32)  # bf16-consistent ref input

    # ---- case 1: class_num=16, norm='none', bf16 streaming weight ----------
    class_num = 16
    w1 = init_ftlayer_weight(kw1, class_num)
    wt1, sig1 = prepare_ftlayer_weight(w1, norm="none")           # bf16, pre-padded
    out1 = jax.block_until_ready(
        ftlayer_forward(x, wt1, class_num, apply_sigmoid=sig1))
    assert out1.shape == (batch, class_num)
    ref1_q = x_bf @ wt1.astype(jnp.float32)[:, :class_num]        # same quantization
    ref1_f = x @ w1.T                                             # module semantics
    assert jnp.allclose(out1, ref1_q, atol=1e-3, rtol=1e-3)
    assert jnp.allclose(out1, ref1_f, atol=3.5e-1, rtol=3e-2)

    # ---- case 2: class_num=16, norm='sigmoid', sigmoid pre-applied at init --
    wt2, sig2 = prepare_ftlayer_weight(w1, norm="sigmoid", pre_apply_norm=True)
    assert not sig2
    out2 = jax.block_until_ready(
        ftlayer_forward(x, wt2, class_num, apply_sigmoid=sig2))
    ref2_q = x_bf @ wt2.astype(jnp.float32)[:, :class_num]
    ref2_f = x @ jax.nn.sigmoid(w1).T
    assert out2.shape == (batch, class_num)
    assert jnp.allclose(out2, ref2_q, atol=1e-3, rtol=1e-3)
    assert jnp.allclose(out2, ref2_f, atol=3.5e-1, rtol=3e-2)

    # ---- case 3: class_num=300 (non-128-multiple, multi-tile grid),
    #              norm='sigmoid' applied IN-KERNEL via the tanh identity -----
    class_num2 = 300
    w2 = init_ftlayer_weight(kw2, class_num2)
    wt3, sig3 = prepare_ftlayer_weight(w2, norm="sigmoid", pre_apply_norm=False)
    assert sig3
    out3 = jax.block_until_ready(
        ftlayer_forward(x, wt3, class_num2, apply_sigmoid=sig3, tile_c=128))
    ref3_f = x @ jax.nn.sigmoid(w2).T
    assert out3.shape == (batch, class_num2)
    assert jnp.allclose(out3, ref3_f, atol=3.5e-1, rtol=3e-2)

    # ---- case 4: f32 weight streaming path (bit-faithful option) -----------
    wt4, sig4 = prepare_ftlayer_weight(w2, norm="none", dtype=jnp.float32)
    out4 = jax.block_until_ready(
        ftlayer_forward(x, wt4, class_num2, apply_sigmoid=sig4))
    ref4 = x @ w2.T
    assert out4.shape == (batch, class_num2)
    assert jnp.allclose(out4, ref4, atol=1e-4, rtol=1e-4)

    print("KERNEL_OK")
</pallas_src>

<mosaic_0001>
module attributes {stable_mosaic.version = 11 : i64} {
  func.func @_ftlayer_kernel(%arg0: i32, %arg1: i32, %arg2: memref<8x1000xbf16, #tpu.memory_space<vmem>>, %arg3: memref<1000x128xbf16, #tpu.memory_space<vmem>>, %arg4: memref<8x128xf32, #tpu.memory_space<vmem>>) attributes {dimension_semantics = [#tpu.dimension_semantics<parallel>, #tpu.dimension_semantics<parallel>], iteration_bounds = array<i64: 1, 1>, scalar_prefetch = 0 : i64, scratch_operands = 0 : i64, tpu.core_type = #tpu.core_type<tc>, window_params = [{transform_indices = @transform_0, window_bounds = array<i64: 8, 1000>}, {transform_indices = @transform_1, window_bounds = array<i64: 1000, 128>}, {transform_indices = @transform_2, window_bounds = array<i64: 8, 128>}]} {
    %c0 = arith.constant 0 : index
    %c0_0 = arith.constant 0 : index
    %0 = vector.load %arg3[%c0, %c0_0] : memref<1000x128xbf16, #tpu.memory_space<vmem>>, vector<1000x128xbf16>
    %c0_1 = arith.constant 0 : index
    %c0_2 = arith.constant 0 : index
    %1 = vector.load %arg2[%c0_1, %c0_2] : memref<8x1000xbf16, #tpu.memory_space<vmem>>, vector<8x1000xbf16>
    %cst = arith.constant dense<0.000000e+00> : vector<8x128xf32>
    %2 = tpu.matmul %1, %0, %cst {dimension_numbers = #tpu.dot_dimension_numbers<[1], [0], [0], [1], [0, 0, 1, 1], [], []>} : vector<8x1000xbf16>, vector<1000x128xbf16>, vector<8x128xf32> -> vector<8x128xf32>
    %c0_3 = arith.constant 0 : index
    %c0_4 = arith.constant 0 : index
    %3 = vector.load %arg4[%c0_3, %c0_4] : memref<8x128xf32, #tpu.memory_space<vmem>>, vector<8x128xf32>
    tpu.vector_store %arg4[%c0_3, %c0_4], %2 {strides = array<i32>} : memref<8x128xf32, #tpu.memory_space<vmem>>, vector<8x128xf32>,
    return
  }
  func.func @transform_0(%arg0: i32, %arg1: i32) -> (i32, i32) {
    %c0_i32 = arith.constant 0 : i32
    %c0_i32_0 = arith.constant 0 : i32
    return %arg0, %c0_i32 : i32, i32
  }
  func.func @transform_1(%arg0: i32, %arg1: i32) -> (i32, i32) {
    %c0_i32 = arith.constant 0 : i32
    %c0_i32_0 = arith.constant 0 : i32
    return %c0_i32, %arg1 : i32, i32
  }
  func.func @transform_2(%arg0: i32, %arg1: i32) -> (i32, i32) {
    %c0_i32 = arith.constant 0 : i32
    return %arg0, %arg1 : i32, i32
  }
}

</mosaic_0001>

<llo_original>
// kernel: tpu_custom_call.1
$region0: #{tpu_custom_call.1}
  #allocation0 [shape = 'u32[]', space=smem, size = 0x4, offset = 0x4, fixed_abs, tag = 'smem constant byte address 0x4 - core index']
  #allocation1 [shape = 'u32[144,128]{1,0:T(1,128)}', space=vmem, size = 0x12000, scoped, tag = 'internal scratch']
  %s0 = inlined_call_operand.hbm [shape: bf16[8,1000], index: 0, kind: input, shape index: {}]
  %s1 = inlined_call_operand.hbm [shape: bf16[1000,128], index: 1, kind: input, shape index: {}]
  %s2 = inlined_call_operand.hbm [shape: f32[8,128], index: 2, kind: output, shape index: {}]
  %s3 = sld [smem:[#allocation0]]
  $region26: #{tpu_custom_call.1} parent=0
    _
  %s5 = ssub.s32 1, %s3
  %s6 = scalar_select 0, %s5, %s3
  $region1: #{tpu_custom_call.1} parent=0
    #allocation2 [shape = 'u8[16384]{0}', space=vmem, size = 0x4000, scoped, tag = 'input window, operand 0, single buffered']
    #allocation3 [shape = 's32[1]{0}', space=sflag, size = 0x4, scoped, tag = 'scoped memory for tpu_custom_call.1']
    #allocation4 [shape = 's32[1]{0}', space=sflag, size = 0x4, scoped, tag = 'scoped memory for tpu_custom_call.1']
    #allocation5 [shape = 'u8[256000]{0}', space=vmem, size = 0x3e800, scoped, tag = 'input window, operand 1, single buffered']
    #allocation6 [shape = 's32[1]{0}', space=sflag, size = 0x4, scoped, tag = 'scoped memory for tpu_custom_call.1']
    #allocation7 [shape = 'u8[4096]{0}', space=vmem, size = 0x1000, scoped, tag = 'output window, operand 0, single buffered']
    %7 = vsyncpa [#allocation3], 0
    %8 = vsyncpa [#allocation6], 0
    %9 = vsyncpa [#allocation4], 0
    // Predicated region
    $region2: #{tpu_custom_call.1} parent=1 // pred_check
      _
    $region3: #{tpu_custom_call.1} parent=1 // pred_check_branch
      %11 = sbr.rel (0) target = $region5
    $region4: #{tpu_custom_call.1} parent=1 // pred_region
      %s13 = ssub.s32 512, 512
      %14 = vsyncadd [#allocation3], %s13
      %s16 = sshll.u32 [#allocation2], 4
      %s17 = int_to_ptr.vmem [resolvable:$true] %s16
      %19 = dma.hbm_to_vmem [thread:$0]  %s0, 512, %s17, [#allocation3]
    $region5: #{tpu_custom_call.1} parent=1 // pred_fallthru
      _
    // Predicated region
    $region6: #{tpu_custom_call.1} parent=1 // pred_check
      _
    $region7: #{tpu_custom_call.1} parent=1 // pred_check_branch
      %21 = sbr.rel (0) target = $region9
    $region8: #{tpu_custom_call.1} parent=1 // pred_region
      %s23 = ssub.s32 8000, 8000
      %24 = vsyncadd [#allocation6], %s23
      %s25 = sshll.u32 [#allocation5], 4
      %s26 = int_to_ptr.vmem [resolvable:$true] %s25
      %31 = dma.hbm_to_vmem [thread:$0]  %s1, 8000, %s26, [#allocation6], 64, 64, 4
    $region9: #{tpu_custom_call.1} parent=1 // pred_fallthru
      _
    // Predicated region
    $region10: #{tpu_custom_call.1} parent=1 // pred_check
      _
    $region11: #{tpu_custom_call.1} parent=1 // pred_check_branch
      %33 = sbr.rel (0) target = $region13
    $region12: #{tpu_custom_call.1} parent=1 // pred_region
      %34 = dma.done [#allocation3], 512
    $region13: #{tpu_custom_call.1} parent=1 // pred_fallthru
      _
    // Predicated region
    $region14: #{tpu_custom_call.1} parent=1 // pred_check
      _
    $region15: #{tpu_custom_call.1} parent=1 // pred_check_branch
      %36 = sbr.rel (0) target = $region17
    $region16: #{tpu_custom_call.1} parent=1 // pred_region
      %37 = dma.done [#allocation6], 8000
    $region17: #{tpu_custom_call.1} parent=1 // pred_fallthru
      _
    %v39 = vld [vmem:[#allocation5] sm:$0xf]
    %v40 = vld [vmem:[#allocation5 + $0x4] sm:$0xf]
    %v41 = vld [vmem:[#allocation5 + $0x8] sm:$0xf]
    %v42 = vld [vmem:[#allocation5 + $0xc] sm:$0xf]
    %v43 = vld [vmem:[#allocation5 + $0x10] sm:$0xf]
    %v44 = vld [vmem:[#allocation5 + $0x14] sm:$0xf]
    %v45 = vld [vmem:[#allocation5 + $0x18] sm:$0xf]
    %v46 = vld [vmem:[#allocation5 + $0x1c] sm:$0xf]
    %v47 = vld [vmem:[#allocation5 + $0x20] sm:$0xf]
    %v48 = vld [vmem:[#allocation5 + $0x24] sm:$0xf]
    %v49 = vld [vmem:[#allocation5 + $0x28] sm:$0xf]
    %v50 = vld [vmem:[#allocation5 + $0x2c] sm:$0xf]
    %v51 = vld [vmem:[#allocation5 + $0x30] sm:$0xf]
    %v52 = vld [vmem:[#allocation5 + $0x34] sm:$0xf]
    %v53 = vld [vmem:[#allocation5 + $0x38] sm:$0xf]
    %v54 = vld [vmem:[#allocation5 + $0x3c] sm:$0xf]
    %v55 = vld [vmem:[#allocation5 + $0x40] sm:$0xf]
    %v56 = vld [vmem:[#allocation5 + $0x44] sm:$0xf]
    %v57 = vld [vmem:[#allocation5 + $0x48] sm:$0xf]
    %v58 = vld [vmem:[#allocation5 + $0x4c] sm:$0xf]
    %v59 = vld [vmem:[#allocation5 + $0x50] sm:$0xf]
    %v60 = vld [vmem:[#allocation5 + $0x54] sm:$0xf]
    %v61 = vld [vmem:[#allocation5 + $0x58] sm:$0xf]
    %v62 = vld [vmem:[#allocation5 + $0x5c] sm:$0xf]
    %v63 = vld [vmem:[#allocation5 + $0x60] sm:$0xf]
    %v64 = vld [vmem:[#allocation5 + $0x64] sm:$0xf]
    %v65 = vld [vmem:[#allocation5 + $0x68] sm:$0xf]
    %v66 = vld [vmem:[#allocation5 + $0x6c] sm:$0xf]
    %v67 = vld [vmem:[#allocation5 + $0x70] sm:$0xf]
    %v68 = vld [vmem:[#allocation5 + $0x74] sm:$0xf]
    %v69 = vld [vmem:[#allocation5 + $0x78] sm:$0xf]
    %v70 = vld [vmem:[#allocation5 + $0x7c] sm:$0xf]
    %v71 = vld [vmem:[#allocation5 + $0x80] sm:$0xf]
    %v72 = vld [vmem:[#allocation5 + $0x84] sm:$0xf]
    %v73 = vld [vmem:[#allocation5 + $0x88] sm:$0xf]
    %v74 = vld [vmem:[#allocation5 + $0x8c] sm:$0xf]
    %v75 = vld [vmem:[#allocation5 + $0x90] sm:$0xf]
    %v76 = vld [vmem:[#allocation5 + $0x94] sm:$0xf]
    %v77 = vld [vmem:[#allocation5 + $0x98] sm:$0xf]
    %v78 = vld [vmem:[#allocation5 + $0x9c] sm:$0xf]
    %v79 = vld [vmem:[#allocation5 + $0xa0] sm:$0xf]
    %v80 = vld [vmem:[#allocation5 + $0xa4] sm:$0xf]
    %v81 = vld [vmem:[#allocation5 + $0xa8] sm:$0xf]
    %v82 = vld [vmem:[#allocation5 + $0xac] sm:$0xf]
    %v83 = vld [vmem:[#allocation5 + $0xb0] sm:$0xf]
    %v84 = vld [vmem:[#allocation5 + $0xb4] sm:$0xf]
    %v85 = vld [vmem:[#allocation5 + $0xb8] sm:$0xf]
    %v86 = vld [vmem:[#allocation5 + $0xbc] sm:$0xf]
    %v87 = vld [vmem:[#allocation5 + $0xc0] sm:$0xf]
    %v88 = vld [vmem:[#allocation5 + $0xc4] sm:$0xf]
    %v89 = vld [vmem:[#allocation5 + $0xc8] sm:$0xf]
    %v90 = vld [vmem:[#allocation5 + $0xcc] sm:$0xf]
    %v91 = vld [vmem:[#allocation5 + $0xd0] sm:$0xf]
    %v92 = vld [vmem:[#allocation5 + $0xd4] sm:$0xf]
    %v93 = vld [vmem:[#allocation5 + $0xd8] sm:$0xf]
    %v94 = vld [vmem:[#allocation5 + $0xdc] sm:$0xf]
    %v95 = vld [vmem:[#allocation5 + $0xe0] sm:$0xf]
    %v96 = vld [vmem:[#allocation5 + $0xe4] sm:$0xf]
    %v97 = vld [vmem:[#allocation5 + $0xe8] sm:$0xf]
    %v98 = vld [vmem:[#allocation5 + $0xec] sm:$0xf]
    %v99 = vld [vmem:[#allocation5 + $0xf0] sm:$0xf]
    %v100 = vld [vmem:[#allocation5 + $0xf4] sm:$0xf]
    %v101 = vld [vmem:[#allocation5 + $0xf8] sm:$0xf]
    %v102 = vld [vmem:[#allocation5 + $0xfc] sm:$0xf]
    %v103 = vld [vmem:[#allocation5 + $0x100] sm:$0xf]
    %v104 = vld [vmem:[#allocation5 + $0x104] sm:$0xf]
    %v105 = vld [vmem:[#allocation5 + $0x108] sm:$0xf]
    %v106 = vld [vmem:[#allocation5 + $0x10c] sm:$0xf]
    %v107 = vld [vmem:[#allocation5 + $0x110] sm:$0xf]
    %v108 = vld [vmem:[#allocation5 + $0x114] sm:$0xf]
    %v109 = vld [vmem:[#allocation5 + $0x118] sm:$0xf]
    %v110 = vld [vmem:[#allocation5 + $0x11c] sm:$0xf]
    %v111 = vld [vmem:[#allocation5 + $0x120] sm:$0xf]
    %v112 = vld [vmem:[#allocation5 + $0x124] sm:$0xf]
    %v113 = vld [vmem:[#allocation5 + $0x128] sm:$0xf]
    %v114 = vld [vmem:[#allocation5 + $0x12c] sm:$0xf]
    %v115 = vld [vmem:[#allocation5 + $0x130] sm:$0xf]
    %v116 = vld [vmem:[#allocation5 + $0x134] sm:$0xf]
    %v117 = vld [vmem:[#allocation5 + $0x138] sm:$0xf]
    %v118 = vld [vmem:[#allocation5 + $0x13c] sm:$0xf]
    %v119 = vld [vmem:[#allocation5 + $0x140] sm:$0xf]
    %v120 = vld [vmem:[#allocation5 + $0x144] sm:$0xf]
    %v121 = vld [vmem:[#allocation5 + $0x148] sm:$0xf]
    %v122 = vld [vmem:[#allocation5 + $0x14c] sm:$0xf]
    %v123 = vld [vmem:[#allocation5 + $0x150] sm:$0xf]
    %v124 = vld [vmem:[#allocation5 + $0x154] sm:$0xf]
    %v125 = vld [vmem:[#allocation5 + $0x158] sm:$0xf]
    %v126 = vld [vmem:[#allocation5 + $0x15c] sm:$0xf]
    %v127 = vld [vmem:[#allocation5 + $0x160] sm:$0xf]
    %v128 = vld [vmem:[#allocation5 + $0x164] sm:$0xf]
    %v129 = vld [vmem:[#allocation5 + $0x168] sm:$0xf]
    %v130 = vld [vmem:[#allocation5 + $0x16c] sm:$0xf]
    %v131 = vld [vmem:[#allocation5 + $0x170] sm:$0xf]
    %v132 = vld [vmem:[#allocation5 + $0x174] sm:$0xf]
    %v133 = vld [vmem:[#allocation5 + $0x178] sm:$0xf]
    %v134 = vld [vmem:[#allocation5 + $0x17c] sm:$0xf]
    %v135 = vld [vmem:[#allocation5 + $0x180] sm:$0xf]
    %v136 = vld [vmem:[#allocation5 + $0x184] sm:$0xf]
    %v137 = vld [vmem:[#allocation5 + $0x188] sm:$0xf]
    %v138 = vld [vmem:[#allocation5 + $0x18c] sm:$0xf]
    %v139 = vld [vmem:[#allocation5 + $0x190] sm:$0xf]
    %v140 = vld [vmem:[#allocation5 + $0x194] sm:$0xf]
    %v141 = vld [vmem:[#allocation5 + $0x198] sm:$0xf]
    %v142 = vld [vmem:[#allocation5 + $0x19c] sm:$0xf]
    %v143 = vld [vmem:[#allocation5 + $0x1a0] sm:$0xf]
    %v144 = vld [vmem:[#allocation5 + $0x1a4] sm:$0xf]
    %v145 = vld [vmem:[#allocation5 + $0x1a8] sm:$0xf]
    %v146 = vld [vmem:[#allocation5 + $0x1ac] sm:$0xf]
    %v147 = vld [vmem:[#allocation5 + $0x1b0] sm:$0xf]
    %v148 = vld [vmem:[#allocation5 + $0x1b4] sm:$0xf]
    %v149 = vld [vmem:[#allocation5 + $0x1b8] sm:$0xf]
    %v150 = vld [vmem:[#allocation5 + $0x1bc] sm:$0xf]
    %v151 = vld [vmem:[#allocation5 + $0x1c0] sm:$0xf]
    %v152 = vld [vmem:[#allocation5 + $0x1c4] sm:$0xf]
    %v153 = vld [vmem:[#allocation5 + $0x1c8] sm:$0xf]
    %v154 = vld [vmem:[#allocation5 + $0x1cc] sm:$0xf]
    %v155 = vld [vmem:[#allocation5 + $0x1d0] sm:$0xf]
    %v156 = vld [vmem:[#allocation5 + $0x1d4] sm:$0xf]
    %v157 = vld [vmem:[#allocation5 + $0x1d8] sm:$0xf]
    %v158 = vld [vmem:[#allocation5 + $0x1dc] sm:$0xf]
    %v159 = vld [vmem:[#allocation5 + $0x1e0] sm:$0xf]
    %v160 = vld [vmem:[#allocation5 + $0x1e4] sm:$0xf]
    %v161 = vld [vmem:[#allocation5 + $0x1e8] sm:$0xf]
    %v162 = vld [vmem:[#allocation5 + $0x1ec] sm:$0xf]
    %v163 = vld [vmem:[#allocation5 + $0x1f0] sm:$0xf]
    %v164 = vld [vmem:[#allocation2] sm:$0xff]
    %v165 = vld [vmem:[#allocation2 + $0x8] sm:$0xff]
    %v166 = vld [vmem:[#allocation2 + $0x10] sm:$0xff]
    %v167 = vld [vmem:[#allocation2 + $0x18] sm:$0xff]
    %v172 = vunpack.c.l.b16 %v164
    %v173 = vunpack.c.h.b16 %v164
    %v174 = vunpack.c.l.b16 %v165
    %v175 = vunpack.c.h.b16 %v165
    %v176 = vunpack.c.l.b16 %v166
    %v177 = vunpack.c.h.b16 %v166
    %v178 = vunpack.c.l.b16 %v167
    %v179 = vunpack.c.h.b16 %v167
    %v180 = vpack.c.b16 %v172, %v172
    %v181 = vpack.c.b16 %v173, %v173
    %v182 = vpack.c.b16 %v174, %v174
    %v183 = vpack.c.b16 %v175, %v175
    %v184 = vpack.c.b16 %v176, %v176
    %v185 = vpack.c.b16 %v177, %v177
    %v186 = vpack.c.b16 %v178, %v178
    %v187 = vpack.c.b16 %v179, %v179
    %v320 = vunpack.c.l.b16 %v39
    %v321 = vunpack.c.l.b16 %v40
    %v322 = vunpack.c.l.b16 %v41
    %v323 = vunpack.c.l.b16 %v42
    %v324 = vunpack.c.l.b16 %v43
    %v325 = vunpack.c.l.b16 %v44
    %v326 = vunpack.c.l.b16 %v45
    %v327 = vunpack.c.l.b16 %v46
    %v328 = vunpack.c.l.b16 %v47
    %v329 = vunpack.c.l.b16 %v48
    %v330 = vunpack.c.l.b16 %v49
    %v331 = vunpack.c.l.b16 %v50
    %v332 = vunpack.c.l.b16 %v51
    %v333 = vunpack.c.l.b16 %v52
    %v334 = vunpack.c.l.b16 %v53
    %v335 = vunpack.c.l.b16 %v54
    %v336 = vunpack.c.l.b16 %v55
    %v337 = vunpack.c.l.b16 %v56
    %v338 = vunpack.c.l.b16 %v57
    %v339 = vunpack.c.l.b16 %v58
    %v340 = vunpack.c.l.b16 %v59
    %v341 = vunpack.c.l.b16 %v60
    %v342 = vunpack.c.l.b16 %v61
    %v343 = vunpack.c.l.b16 %v62
    %v344 = vunpack.c.l.b16 %v63
    %v345 = vunpack.c.l.b16 %v64
    %v346 = vunpack.c.l.b16 %v65
    %v347 = vunpack.c.l.b16 %v66
    %v348 = vunpack.c.l.b16 %v67
    %v349 = vunpack.c.l.b16 %v68
    %v350 = vunpack.c.l.b16 %v69
    %v351 = vunpack.c.l.b16 %v70
    %v352 = vunpack.c.l.b16 %v71
    %v353 = vunpack.c.l.b16 %v72
    %v354 = vunpack.c.l.b16 %v73
    %v355 = vunpack.c.l.b16 %v74
    %v356 = vunpack.c.l.b16 %v75
    %v357 = vunpack.c.l.b16 %v76
    %v358 = vunpack.c.l.b16 %v77
    %v359 = vunpack.c.l.b16 %v78
    %v360 = vunpack.c.l.b16 %v79
    %v361 = vunpack.c.l.b16 %v80
    %v362 = vunpack.c.l.b16 %v81
    %v363 = vunpack.c.l.b16 %v82
    %v364 = vunpack.c.l.b16 %v83
    %v365 = vunpack.c.l.b16 %v84
    %v366 = vunpack.c.l.b16 %v85
    %v367 = vunpack.c.l.b16 %v86
    %v368 = vunpack.c.l.b16 %v87
    %v369 = vunpack.c.l.b16 %v88
    %v370 = vunpack.c.l.b16 %v89
    %v371 = vunpack.c.l.b16 %v90
    %v372 = vunpack.c.l.b16 %v91
    %v373 = vunpack.c.l.b16 %v92
    %v374 = vunpack.c.l.b16 %v93
    %v375 = vunpack.c.l.b16 %v94
    %v376 = vunpack.c.l.b16 %v95
    %v377 = vunpack.c.l.b16 %v96
    %v378 = vunpack.c.l.b16 %v97
    %v379 = vunpack.c.l.b16 %v98
    %v380 = vunpack.c.l.b16 %v99
    %v381 = vunpack.c.l.b16 %v100
    %v382 = vunpack.c.l.b16 %v101
    %v383 = vunpack.c.l.b16 %v102
    %v384 = vunpack.c.l.b16 %v103
    %v385 = vunpack.c.l.b16 %v104
    %v386 = vunpack.c.l.b16 %v105
    %v387 = vunpack.c.l.b16 %v106
    %v388 = vunpack.c.l.b16 %v107
    %v389 = vunpack.c.l.b16 %v108
    %v390 = vunpack.c.l.b16 %v109
    %v391 = vunpack.c.l.b16 %v110
    %v392 = vunpack.c.l.b16 %v111
    %v393 = vunpack.c.l.b16 %v112
    %v394 = vunpack.c.l.b16 %v113
    %v395 = vunpack.c.l.b16 %v114
    %v396 = vunpack.c.l.b16 %v115
    %v397 = vunpack.c.l.b16 %v116
    %v398 = vunpack.c.l.b16 %v117
    %v399 = vunpack.c.l.b16 %v118
    %v400 = vunpack.c.l.b16 %v119
    %v401 = vunpack.c.l.b16 %v120
    %v402 = vunpack.c.l.b16 %v121
    %v403 = vunpack.c.l.b16 %v122
    %v404 = vunpack.c.l.b16 %v123
    %v405 = vunpack.c.l.b16 %v124
    %v406 = vunpack.c.l.b16 %v125
    %v407 = vunpack.c.l.b16 %v126
    %v408 = vunpack.c.l.b16 %v127
    %v409 = vunpack.c.l.b16 %v128
    %v410 = vunpack.c.l.b16 %v129
    %v411 = vunpack.c.l.b16 %v130
    %v412 = vunpack.c.l.b16 %v131
    %v413 = vunpack.c.l.b16 %v132
    %v414 = vunpack.c.l.b16 %v133
    %v415 = vunpack.c.l.b16 %v134
    %v416 = vunpack.c.l.b16 %v135
    %v417 = vunpack.c.l.b16 %v136
    %v418 = vunpack.c.l.b16 %v137
    %v419 = vunpack.c.l.b16 %v138
    %v420 = vunpack.c.l.b16 %v139
    %v421 = vunpack.c.l.b16 %v140
    %v422 = vunpack.c.l.b16 %v141
    %v423 = vunpack.c.l.b16 %v142
    %v424 = vunpack.c.l.b16 %v143
    %v425 = vunpack.c.l.b16 %v144
    %v426 = vunpack.c.l.b16 %v145
    %v427 = vunpack.c.l.b16 %v146
    %v428 = vunpack.c.l.b16 %v147
    %v429 = vunpack.c.l.b16 %v148
    %v430 = vunpack.c.l.b16 %v149
    %v431 = vunpack.c.l.b16 %v150
    %v432 = vunpack.c.l.b16 %v151
    %v433 = vunpack.c.l.b16 %v152
    %v434 = vunpack.c.l.b16 %v153
    %v435 = vunpack.c.l.b16 %v154
    %v436 = vunpack.c.l.b16 %v155
    %v437 = vunpack.c.l.b16 %v156
    %v438 = vunpack.c.l.b16 %v157
    %v439 = vunpack.c.l.b16 %v158
    %v440 = vunpack.c.l.b16 %v159
    %v441 = vunpack.c.l.b16 %v160
    %v442 = vunpack.c.l.b16 %v161
    %v443 = vunpack.c.l.b16 %v162
    %v444 = vunpack.c.l.b16 %v163
    %v445 = vpack.c.b16 %v321, %v320
    %v446 = vpack.c.b16 %v323, %v322
    %v447 = vpack.c.b16 %v325, %v324
    %v448 = vpack.c.b16 %v327, %v326
    %v449 = vpack.c.b16 %v329, %v328
    %v450 = vpack.c.b16 %v331, %v330
    %v451 = vpack.c.b16 %v333, %v332
    %v452 = vpack.c.b16 %v335, %v334
    %v453 = vpack.c.b16 %v337, %v336
    %v454 = vpack.c.b16 %v339, %v338
    %v455 = vpack.c.b16 %v341, %v340
    %v456 = vpack.c.b16 %v343, %v342
    %v457 = vpack.c.b16 %v345, %v344
    %v458 = vpack.c.b16 %v347, %v346
    %v459 = vpack.c.b16 %v349, %v348
    %v460 = vpack.c.b16 %v351, %v350
    %v461 = vpack.c.b16 %v353, %v352
    %v462 = vpack.c.b16 %v355, %v354
    %v463 = vpack.c.b16 %v357, %v356
    %v464 = vpack.c.b16 %v359, %v358
    %v465 = vpack.c.b16 %v361, %v360
    %v466 = vpack.c.b16 %v363, %v362
    %v467 = vpack.c.b16 %v365, %v364
    %v468 = vpack.c.b16 %v367, %v366
    %v469 = vpack.c.b16 %v369, %v368
    %v470 = vpack.c.b16 %v371, %v370
    %v471 = vpack.c.b16 %v373, %v372
    %v472 = vpack.c.b16 %v375, %v374
    %v473 = vpack.c.b16 %v377, %v376
    %v474 = vpack.c.b16 %v379, %v378
    %v475 = vpack.c.b16 %v381, %v380
    %v476 = vpack.c.b16 %v383, %v382
    %v477 = vpack.c.b16 %v385, %v384
    %v478 = vpack.c.b16 %v387, %v386
    %v479 = vpack.c.b16 %v389, %v388
    %v480 = vpack.c.b16 %v391, %v390
    %v481 = vpack.c.b16 %v393, %v392
    %v482 = vpack.c.b16 %v395, %v394
    %v483 = vpack.c.b16 %v397, %v396
    %v484 = vpack.c.b16 %v399, %v398
    %v485 = vpack.c.b16 %v401, %v400
    %v486 = vpack.c.b16 %v403, %v402
    %v487 = vpack.c.b16 %v405, %v404
    %v488 = vpack.c.b16 %v407, %v406
    %v489 = vpack.c.b16 %v409, %v408
    %v490 = vpack.c.b16 %v411, %v410
    %v491 = vpack.c.b16 %v413, %v412
    %v492 = vpack.c.b16 %v415, %v414
    %v493 = vpack.c.b16 %v417, %v416
    %v494 = vpack.c.b16 %v419, %v418
    %v495 = vpack.c.b16 %v421, %v420
    %v496 = vpack.c.b16 %v423, %v422
    %v497 = vpack.c.b16 %v425, %v424
    %v498 = vpack.c.b16 %v427, %v426
    %v499 = vpack.c.b16 %v429, %v428
    %v500 = vpack.c.b16 %v431, %v430
    %v501 = vpack.c.b16 %v433, %v432
    %v502 = vpack.c.b16 %v435, %v434
    %v503 = vpack.c.b16 %v437, %v436
    %v504 = vpack.c.b16 %v439, %v438
    %v505 = vpack.c.b16 %v441, %v440
    %v506 = vpack.c.b16 %v443, %v442
    %v507 = vpack.c.b16 %v444, %v444
    %vm570 = vcmask 850944
    %v572 = vsel %vm570, %v187, 0
    %vm574 = vcmask 1043456
    %v576 = vsel %vm574, %v507, 0
    %578 = vmatprep.subr.bf16.mxu0 0
    %579 = vmatpush1.bf16.msra.mxu0 %v452
    %580 = vmatprep.subr.bf16.mxu0 0
    %581 = vmatpush1.bf16.msra.mxu0 %v451
    %582 = vmatprep.subr.bf16.mxu0 0
    %583 = vmatpush1.bf16.msra.mxu0 %v450
    %584 = vmatprep.subr.bf16.mxu0 0
    %585 = vmatpush1.bf16.msra.mxu0 %v449
    %586 = vmatprep.subr.bf16.mxu0 0
    %587 = vmatpush1.bf16.msra.mxu0 %v448
    %588 = vmatprep.subr.bf16.mxu0 0
    %589 = vmatpush1.bf16.msra.mxu0 %v447
    %590 = vmatprep.subr.bf16.mxu0 0
    %591 = vmatpush1.bf16.msra.mxu0 %v446
    %592 = vmatprep.subr.bf16.mxu0 0
    %593 = vmatpush1.bf16.msra.mxu0 %v445
    %594 = vmatprep.subr.bf16.mxu0 0
    %595 = vmatpush2.bf16.msra.mxu0 %v460
    %596 = vmatprep.subr.bf16.mxu0 0
    %597 = vmatpush2.bf16.msra.mxu0 %v459
    %598 = vmatprep.subr.bf16.mxu0 0
    %599 = vmatpush2.bf16.msra.mxu0 %v458
    %600 = vmatprep.subr.bf16.mxu0 0
    %601 = vmatpush2.bf16.msra.mxu0 %v457
    %602 = vmatprep.subr.bf16.mxu0 0
    %603 = vmatpush2.bf16.msra.mxu0 %v456
    %604 = vmatprep.subr.bf16.mxu0 0
    %605 = vmatpush2.bf16.msra.mxu0 %v455
    %606 = vmatprep.subr.bf16.mxu0 0
    %607 = vmatpush2.bf16.msra.mxu0 %v454
    %608 = vmatprep.subr.bf16.mxu0 0
    %609 = vmatpush2.bf16.msra.mxu0 %v453
    %610 = vmatprep.mubr.bf16.mxu0 %v181
    %611 = vmatmul.mubr.bf16.gmra.mxu0 %v180
    %v612 = vpop.f32.mrf.mxu0
    %v613 = vadd.f32 0.0, %v612
    %v614 = vpop.f32.mrf.mxu0
    %v615 = vpop.f32.mrf.mxu0
    %v616 = vpop.f32.mrf.mxu0
    %617 = vdwg.mxu0
    %618 = vmatprep.subr.bf16.mxu0 0
    %619 = vmatpush1.bf16.msra.mxu0 %v468
    %620 = vmatprep.subr.bf16.mxu0 0
    %621 = vmatpush1.bf16.msra.mxu0 %v467
    %622 = vmatprep.subr.bf16.mxu0 0
    %623 = vmatpush1.bf16.msra.mxu0 %v466
    %624 = vmatprep.subr.bf16.mxu0 0
    %625 = vmatpush1.bf16.msra.mxu0 %v465
    %626 = vmatprep.subr.bf16.mxu0 0
    %627 = vmatpush1.bf16.msra.mxu0 %v464
    %628 = vmatprep.subr.bf16.mxu0 0
    %629 = vmatpush1.bf16.msra.mxu0 %v463
    %630 = vmatprep.subr.bf16.mxu0 0
    %631 = vmatpush1.bf16.msra.mxu0 %v462
    %632 = vmatprep.subr.bf16.mxu0 0
    %633 = vmatpush1.bf16.msra.mxu0 %v461
    %634 = vmatprep.subr.bf16.mxu0 0
    %635 = vmatpush2.bf16.msra.mxu0 %v476
    %636 = vmatprep.subr.bf16.mxu0 0
    %637 = vmatpush2.bf16.msra.mxu0 %v475
    %638 = vmatprep.subr.bf16.mxu0 0
    %639 = vmatpush2.bf16.msra.mxu0 %v474
    %640 = vmatprep.subr.bf16.mxu0 0
    %641 = vmatpush2.bf16.msra.mxu0 %v473
    %642 = vmatprep.subr.bf16.mxu0 0
    %643 = vmatpush2.bf16.msra.mxu0 %v472
    %644 = vmatprep.subr.bf16.mxu0 0
    %645 = vmatpush2.bf16.msra.mxu0 %v471
    %646 = vmatprep.subr.bf16.mxu0 0
    %647 = vmatpush2.bf16.msra.mxu0 %v470
    %648 = vmatprep.subr.bf16.mxu0 0
    %649 = vmatpush2.bf16.msra.mxu0 %v469
    %650 = vmatprep.mubr.bf16.mxu0 %v183
    %651 = vmatmul.mubr.bf16.gmra.mxu0 %v182
    %v652 = vpop.f32.mrf.mxu0
    %v653 = vadd.f32 %v613, %v652
    %v654 = vpop.f32.mrf.mxu0
    %v655 = vpop.f32.mrf.mxu0
    %v656 = vpop.f32.mrf.mxu0
    %657 = vdwg.mxu0
    %658 = vmatprep.subr.bf16.mxu0 0
    %659 = vmatpush1.bf16.msra.mxu0 %v484
    %660 = vmatprep.subr.bf16.mxu0 0
    %661 = vmatpush1.bf16.msra.mxu0 %v483
    %662 = vmatprep.subr.bf16.mxu0 0
    %663 = vmatpush1.bf16.msra.mxu0 %v482
    %664 = vmatprep.subr.bf16.mxu0 0
    %665 = vmatpush1.bf16.msra.mxu0 %v481
    %666 = vmatprep.subr.bf16.mxu0 0
    %667 = vmatpush1.bf16.msra.mxu0 %v480
    %668 = vmatprep.subr.bf16.mxu0 0
    %669 = vmatpush1.bf16.msra.mxu0 %v479
    %670 = vmatprep.subr.bf16.mxu0 0
    %671 = vmatpush1.bf16.msra.mxu0 %v478
    %672 = vmatprep.subr.bf16.mxu0 0
    %673 = vmatpush1.bf16.msra.mxu0 %v477
    %674 = vmatprep.subr.bf16.mxu0 0
    %675 = vmatpush2.bf16.msra.mxu0 %v492
    %676 = vmatprep.subr.bf16.mxu0 0
    %677 = vmatpush2.bf16.msra.mxu0 %v491
    %678 = vmatprep.subr.bf16.mxu0 0
    %679 = vmatpush2.bf16.msra.mxu0 %v490
    %680 = vmatprep.subr.bf16.mxu0 0
    %681 = vmatpush2.bf16.msra.mxu0 %v489
    %682 = vmatprep.subr.bf16.mxu0 0
    %683 = vmatpush2.bf16.msra.mxu0 %v488
    %684 = vmatprep.subr.bf16.mxu0 0
    %685 = vmatpush2.bf16.msra.mxu0 %v487
    %686 = vmatprep.subr.bf16.mxu0 0
    %687 = vmatpush2.bf16.msra.mxu0 %v486
    %688 = vmatprep.subr.bf16.mxu0 0
    %689 = vmatpush2.bf16.msra.mxu0 %v485
    %690 = vmatprep.mubr.bf16.mxu0 %v185
    %691 = vmatmul.mubr.bf16.gmra.mxu0 %v184
    %v692 = vpop.f32.mrf.mxu0
    %v693 = vadd.f32 %v653, %v692
    %v694 = vpop.f32.mrf.mxu0
    %v695 = vpop.f32.mrf.mxu0
    %v696 = vpop.f32.mrf.mxu0
    %697 = vdwg.mxu0
    %698 = vmatprep.subr.bf16.mxu0 0
    %699 = vmatpush1.bf16.msra.mxu0 %v500
    %700 = vmatprep.subr.bf16.mxu0 0
    %701 = vmatpush1.bf16.msra.mxu0 %v499
    %702 = vmatprep.subr.bf16.mxu0 0
    %703 = vmatpush1.bf16.msra.mxu0 %v498
    %704 = vmatprep.subr.bf16.mxu0 0
    %705 = vmatpush1.bf16.msra.mxu0 %v497
    %706 = vmatprep.subr.bf16.mxu0 0
    %707 = vmatpush1.bf16.msra.mxu0 %v496
    %708 = vmatprep.subr.bf16.mxu0 0
    %709 = vmatpush1.bf16.msra.mxu0 %v495
    %710 = vmatprep.subr.bf16.mxu0 0
    %711 = vmatpush1.bf16.msra.mxu0 %v494
    %712 = vmatprep.subr.bf16.mxu0 0
    %713 = vmatpush1.bf16.msra.mxu0 %v493
    %714 = vmatprep.subr.bf16.mxu0 0
    %715 = vmatpush2.bf16.msra.mxu0 0
    %716 = vmatprep.subr.bf16.mxu0 0
    %717 = vmatpush2.bf16.msra.mxu0 %v576
    %718 = vmatprep.subr.bf16.mxu0 0
    %719 = vmatpush2.bf16.msra.mxu0 %v506
    %720 = vmatprep.subr.bf16.mxu0 0
    %721 = vmatpush2.bf16.msra.mxu0 %v505
    %722 = vmatprep.subr.bf16.mxu0 0
    %723 = vmatpush2.bf16.msra.mxu0 %v504
    %724 = vmatprep.subr.bf16.mxu0 0
    %725 = vmatpush2.bf16.msra.mxu0 %v503
    %726 = vmatprep.subr.bf16.mxu0 0
    %727 = vmatpush2.bf16.msra.mxu0 %v502
    %728 = vmatprep.subr.bf16.mxu0 0
    %729 = vmatpush2.bf16.msra.mxu0 %v501
    %730 = vmatprep.mubr.bf16.mxu0 %v572
    %731 = vmatmul.mubr.bf16.gmra.mxu0 %v186
    %v732 = vpop.f32.mrf.mxu0
    %v733 = vadd.f32 %v693, %v732
    %v734 = vpop.f32.mrf.mxu0
    %v735 = vpop.f32.mrf.mxu0
    %v736 = vpop.f32.mrf.mxu0
    %737 = vdwg.mxu0
    %738 = vst [vmem:[#allocation7] sm:$0xff] %v733
    // Predicated region
    $region18: #{tpu_custom_call.1} parent=1 // pred_check
      _
    $region19: #{tpu_custom_call.1} parent=1 // pred_check_branch
      %740 = sbr.rel (0) target = $region21
    $region20: #{tpu_custom_call.1} parent=1 // pred_region
      %s742 = ssub.s32 128, 128
      %743 = vsyncadd [#allocation4], %s742
      %s745 = sshll.u32 [#allocation7], 4
      %s746 = int_to_ptr.vmem [resolvable:$true] %s745
      %748 = dma.vmem_to_hbm [thread:$0]  %s746, 128, %s2, [#allocation4]
    $region21: #{tpu_custom_call.1} parent=1 // pred_fallthru
      _
    // Predicated region
    $region22: #{tpu_custom_call.1} parent=1 // pred_check
      _
    $region23: #{tpu_custom_call.1} parent=1 // pred_check_branch
      %750 = sbr.rel (0) target = $region25
    $region24: #{tpu_custom_call.1} parent=1 // pred_region
      %751 = dma.done [#allocation4], 128
    $region25: #{tpu_custom_call.1} parent=1 // pred_fallthru
      _
    %752 = vsyncpa [#allocation3], 1
    %753 = vsyncpa [#allocation6], 1
    %754 = vsyncpa [#allocation4], 1

</llo_original>
